<compile_context>
chip_gen: v7x
topology: tpu7x:2x2x1
jax: 0.10.0
libtpu: 0.0.40
codegen_flags: <defaults>
</compile_context>

<pallas_src>
import jax
import jax.numpy as jnp
from jax.experimental import pallas as pl
from jax.experimental.pallas import tpu as pltpu


def _q_kernel(obs_ref, act_ref, w1o_ref, w1a_ref, b1_ref,
              w2_ref, b2_ref, w3_ref, b3_ref, out_ref):
    wdt = w1o_ref.dtype  # MXU input dtype (f32 or bf16)

    # Layer 1: concat(obs, act) @ W1 + b1 as a split matmul, then ReLU.
    h1 = (jnp.dot(obs_ref[...].astype(wdt), w1o_ref[...],
                  preferred_element_type=jnp.float32)
          + jnp.dot(act_ref[...].astype(wdt), w1a_ref[...],
                    preferred_element_type=jnp.float32)
          + b1_ref[...])
    h1 = jnp.maximum(h1, 0.0)

    # Layer 2: Linear + ReLU.
    h2 = jnp.dot(h1.astype(wdt), w2_ref[...],
                 preferred_element_type=jnp.float32) + b2_ref[...]
    h2 = jnp.maximum(h2, 0.0)

    # Output layer: Linear (identity activation), out_features == 1.
    q = jnp.dot(h2.astype(wdt), w3_ref[...],
                preferred_element_type=jnp.float32) + b3_ref[...]
    out_ref[...] = q.astype(out_ref.dtype)


def prepare_params(params, obs_dim, act_dim, param_dtype=jnp.float32):
    """One-time prep: transpose PyTorch-layout weights (out,in) -> (in,out),
    split W1 into obs/act halves, reshape biases to (1, out), cast weights.
    Call at init / after each optimizer step, NOT per forward call."""
    w1t = params["w1"].T.astype(param_dtype)             # (obs_dim+act_dim, h1)
    return {
        "w1_obs": w1t[:obs_dim, :],
        "w1_act": w1t[obs_dim:obs_dim + act_dim, :],
        "w2": params["w2"].T.astype(param_dtype),         # (h1, h2)
        "w3": params["w3"].T.astype(param_dtype),         # (h2, 1)
        "b1": params["b1"].reshape(1, -1).astype(jnp.float32),
        "b2": params["b2"].reshape(1, -1).astype(jnp.float32),
        "b3": params["b3"].reshape(1, -1).astype(jnp.float32),
    }


def _choose_tile_b(batch, target=512):
    if batch <= target:
        return batch                       # full-dim block is always legal
    return max(8, (target // 8) * 8)       # multiple of 8 when tiling


def mlp_q_forward(obs, act, prepped, *, tile_b=512):
    """obs: (B, obs_dim) f32, act: (B, act_dim) f32, prepped: prepare_params().
    Returns q-values of shape (B,)."""
    B, obs_dim = obs.shape
    act_dim = act.shape[1]
    h1 = prepped["w1_obs"].shape[1]
    h2 = prepped["w2"].shape[1]

    tb = _choose_tile_b(B, tile_b)
    grid = (pl.cdiv(B, tb),)

    def batch_spec(cols):
        return pl.BlockSpec((tb, cols), lambda i: (i, 0))

    def resident(rows, cols):
        return pl.BlockSpec((rows, cols), lambda i: (0, 0))

    out = pl.pallas_call(
        _q_kernel,
        out_shape=jax.ShapeDtypeStruct((B, 1), jnp.float32),
        grid=grid,
        in_specs=[
            batch_spec(obs_dim),           # obs    (tiled over batch)
            batch_spec(act_dim),           # act    (tiled over batch)
            resident(obs_dim, h1),         # w1_obs (resident across grid)
            resident(act_dim, h1),         # w1_act
            resident(1, h1),               # b1
            resident(h1, h2),              # w2
            resident(1, h2),               # b2
            resident(h2, 1),               # w3
            resident(1, 1),                # b3
        ],
        out_specs=batch_spec(1),
        compiler_params=pltpu.CompilerParams(
            dimension_semantics=("parallel",),
            vmem_limit_bytes=32 * 1024 * 1024,
        ),
    )(obs, act, prepped["w1_obs"], prepped["w1_act"], prepped["b1"],
      prepped["w2"], prepped["b2"], prepped["w3"], prepped["b3"])

    return out[:, 0]                       # squeeze(-1)


def init_params(key, obs_dim, act_dim, hidden_sizes):
    """Deterministic init mimicking PyTorch Linear default (uniform +-1/sqrt(fan_in)).
    Layout matches nn.Linear: weight (out_features, in_features), bias (out_features,)."""
    sizes = [obs_dim + act_dim] + list(hidden_sizes) + [1]
    params = {}
    for j in range(len(sizes) - 1):
        fan_in, fan_out = sizes[j], sizes[j + 1]
        key, kw, kb = jax.random.split(key, 3)
        bound = 1.0 / jnp.sqrt(fan_in)
        params[f"w{j+1}"] = jax.random.uniform(
            kw, (fan_out, fan_in), jnp.float32, -bound, bound)
        params[f"b{j+1}"] = jax.random.uniform(
            kb, (fan_out,), jnp.float32, -bound, bound)
    return params


def _reference(obs, act, params):
    x = jnp.concatenate([obs, act], axis=-1)
    x = jnp.maximum(x @ params["w1"].T + params["b1"], 0.0)
    x = jnp.maximum(x @ params["w2"].T + params["b2"], 0.0)
    q = x @ params["w3"].T + params["b3"]
    return jnp.squeeze(q, -1)


if __name__ == "__main__":
    obs_dim, act_dim = 32, 8
    hidden_sizes = (32, 32)
    batch = 8

    key = jax.random.PRNGKey(0)
    key, kobs, kact = jax.random.split(key, 3)
    obs = jax.random.normal(kobs, (batch, obs_dim), dtype=jnp.float32)
    act = jax.random.normal(kact, (batch, act_dim), dtype=jnp.float32)
    params = init_params(key, obs_dim, act_dim, hidden_sizes)

    # One-time param prep (transpose / split / reshape hoisted off the hot path).
    prepped = prepare_params(params, obs_dim, act_dim, param_dtype=jnp.float32)

    q = mlp_q_forward(obs, act, prepped)
    q = jax.block_until_ready(q)

    ref = _reference(obs, act, params)
    assert q.shape == (batch,), q.shape
    assert jnp.allclose(q, ref, atol=1e-5, rtol=1e-5), (q, ref)
    print("KERNEL_OK")
</pallas_src>

<mosaic_0001>
module attributes {stable_mosaic.version = 11 : i64} {
  func.func @_q_kernel(%arg0: i32, %arg1: memref<8x32xf32, #tpu.memory_space<vmem>>, %arg2: memref<8x8xf32, #tpu.memory_space<vmem>>, %arg3: memref<32x32xf32, #tpu.memory_space<vmem>>, %arg4: memref<8x32xf32, #tpu.memory_space<vmem>>, %arg5: memref<1x32xf32, #tpu.memory_space<vmem>>, %arg6: memref<32x32xf32, #tpu.memory_space<vmem>>, %arg7: memref<1x32xf32, #tpu.memory_space<vmem>>, %arg8: memref<32x1xf32, #tpu.memory_space<vmem>>, %arg9: memref<1x1xf32, #tpu.memory_space<vmem>>, %arg10: memref<8x1xf32, #tpu.memory_space<vmem>>) attributes {dimension_semantics = [#tpu.dimension_semantics<parallel>], iteration_bounds = array<i64: 1>, scalar_prefetch = 0 : i64, scratch_operands = 0 : i64, tpu.core_type = #tpu.core_type<tc>, window_params = [{transform_indices = @transform_0, window_bounds = array<i64: 8, 32>}, {transform_indices = @transform_1, window_bounds = array<i64: 8, 8>}, {pipeline_mode = #tpu.pipeline_mode<synchronous>, transform_indices = @transform_2, window_bounds = array<i64: 32, 32>}, {pipeline_mode = #tpu.pipeline_mode<synchronous>, transform_indices = @transform_3, window_bounds = array<i64: 8, 32>}, {pipeline_mode = #tpu.pipeline_mode<synchronous>, transform_indices = @transform_4, window_bounds = array<i64: 1, 32>}, {pipeline_mode = #tpu.pipeline_mode<synchronous>, transform_indices = @transform_5, window_bounds = array<i64: 32, 32>}, {pipeline_mode = #tpu.pipeline_mode<synchronous>, transform_indices = @transform_6, window_bounds = array<i64: 1, 32>}, {pipeline_mode = #tpu.pipeline_mode<synchronous>, transform_indices = @transform_7, window_bounds = array<i64: 32, 1>}, {pipeline_mode = #tpu.pipeline_mode<synchronous>, transform_indices = @transform_8, window_bounds = array<i64: 1, 1>}, {transform_indices = @transform_9, window_bounds = array<i64: 8, 1>}]} {
    %c0 = arith.constant 0 : index
    %c0_0 = arith.constant 0 : index
    %0 = vector.load %arg1[%c0, %c0_0] : memref<8x32xf32, #tpu.memory_space<vmem>>, vector<8x32xf32>
    %c0_1 = arith.constant 0 : index
    %c0_2 = arith.constant 0 : index
    %1 = vector.load %arg3[%c0_1, %c0_2] : memref<32x32xf32, #tpu.memory_space<vmem>>, vector<32x32xf32>
    %cst = arith.constant dense<0.000000e+00> : vector<8x32xf32>
    %2 = tpu.matmul %0, %1, %cst {dimension_numbers = #tpu.dot_dimension_numbers<[1], [0], [0], [1], [0, 0, 1, 1], [], []>} : vector<8x32xf32>, vector<32x32xf32>, vector<8x32xf32> -> vector<8x32xf32>
    %c0_3 = arith.constant 0 : index
    %c0_4 = arith.constant 0 : index
    %3 = vector.load %arg2[%c0_3, %c0_4] : memref<8x8xf32, #tpu.memory_space<vmem>>, vector<8x8xf32>
    %c0_5 = arith.constant 0 : index
    %c0_6 = arith.constant 0 : index
    %4 = vector.load %arg4[%c0_5, %c0_6] : memref<8x32xf32, #tpu.memory_space<vmem>>, vector<8x32xf32>
    %cst_7 = arith.constant dense<0.000000e+00> : vector<8x32xf32>
    %5 = tpu.matmul %3, %4, %cst_7 {dimension_numbers = #tpu.dot_dimension_numbers<[1], [0], [0], [1], [0, 0, 1, 1], [], []>} : vector<8x8xf32>, vector<8x32xf32>, vector<8x32xf32> -> vector<8x32xf32>
    %6 = arith.addf %2, %5 : vector<8x32xf32>
    %c0_8 = arith.constant 0 : index
    %c0_9 = arith.constant 0 : index
    %7 = vector.load %arg5[%c0_8, %c0_9] : memref<1x32xf32, #tpu.memory_space<vmem>>, vector<1x32xf32>
    %8 = vector.broadcast %7 : vector<1x32xf32> to vector<8x32xf32>
    %9 = arith.addf %6, %8 : vector<8x32xf32>
    %cst_10 = arith.constant 0.000000e+00 : f32
    %10 = vector.broadcast %cst_10 : f32 to vector<8x32xf32>
    %11 = arith.maximumf %9, %10 : vector<8x32xf32>
    %c0_11 = arith.constant 0 : index
    %c0_12 = arith.constant 0 : index
    %12 = vector.load %arg6[%c0_11, %c0_12] : memref<32x32xf32, #tpu.memory_space<vmem>>, vector<32x32xf32>
    %cst_13 = arith.constant dense<0.000000e+00> : vector<8x32xf32>
    %13 = tpu.matmul %11, %12, %cst_13 {dimension_numbers = #tpu.dot_dimension_numbers<[1], [0], [0], [1], [0, 0, 1, 1], [], []>} : vector<8x32xf32>, vector<32x32xf32>, vector<8x32xf32> -> vector<8x32xf32>
    %c0_14 = arith.constant 0 : index
    %c0_15 = arith.constant 0 : index
    %14 = vector.load %arg7[%c0_14, %c0_15] : memref<1x32xf32, #tpu.memory_space<vmem>>, vector<1x32xf32>
    %15 = vector.broadcast %14 : vector<1x32xf32> to vector<8x32xf32>
    %16 = arith.addf %13, %15 : vector<8x32xf32>
    %cst_16 = arith.constant 0.000000e+00 : f32
    %17 = vector.broadcast %cst_16 : f32 to vector<8x32xf32>
    %18 = arith.maximumf %16, %17 : vector<8x32xf32>
    %c0_17 = arith.constant 0 : index
    %c0_18 = arith.constant 0 : index
    %19 = vector.load %arg8[%c0_17, %c0_18] : memref<32x1xf32, #tpu.memory_space<vmem>>, vector<32x1xf32>
    %cst_19 = arith.constant dense<0.000000e+00> : vector<8x1xf32>
    %20 = tpu.matmul %18, %19, %cst_19 {dimension_numbers = #tpu.dot_dimension_numbers<[1], [0], [0], [1], [0, 0, 1, 1], [], []>} : vector<8x32xf32>, vector<32x1xf32>, vector<8x1xf32> -> vector<8x1xf32>
    %c0_20 = arith.constant 0 : index
    %c0_21 = arith.constant 0 : index
    %21 = vector.load %arg9[%c0_20, %c0_21] : memref<1x1xf32, #tpu.memory_space<vmem>>, vector<1x1xf32>
    %22 = vector.broadcast %21 : vector<1x1xf32> to vector<8x1xf32>
    %23 = arith.addf %20, %22 : vector<8x1xf32>
    %c0_22 = arith.constant 0 : index
    %c0_23 = arith.constant 0 : index
    %24 = vector.load %arg10[%c0_22, %c0_23] : memref<8x1xf32, #tpu.memory_space<vmem>>, vector<8x1xf32>
    tpu.vector_store %arg10[%c0_22, %c0_23], %23 {strides = array<i32>} : memref<8x1xf32, #tpu.memory_space<vmem>>, vector<8x1xf32>,
    return
  }
  func.func @transform_0(%arg0: i32) -> (i32, i32) {
    %c0_i32 = arith.constant 0 : i32
    %c0_i32_0 = arith.constant 0 : i32
    return %arg0, %c0_i32 : i32, i32
  }
  func.func @transform_1(%arg0: i32) -> (i32, i32) {
    %c0_i32 = arith.constant 0 : i32
    %c0_i32_0 = arith.constant 0 : i32
    return %arg0, %c0_i32 : i32, i32
  }
  func.func @transform_2(%arg0: i32) -> (i32, i32) {
    %c0_i32 = arith.constant 0 : i32
    %c0_i32_0 = arith.constant 0 : i32
    %c0_i32_1 = arith.constant 0 : i32
    return %c0_i32, %c0_i32_0 : i32, i32
  }
  func.func @transform_3(%arg0: i32) -> (i32, i32) {
    %c0_i32 = arith.constant 0 : i32
    %c0_i32_0 = arith.constant 0 : i32
    %c0_i32_1 = arith.constant 0 : i32
    return %c0_i32, %c0_i32_0 : i32, i32
  }
  func.func @transform_4(%arg0: i32) -> (i32, i32) {
    %c0_i32 = arith.constant 0 : i32
    %c0_i32_0 = arith.constant 0 : i32
    %c0_i32_1 = arith.constant 0 : i32
    return %c0_i32, %c0_i32_0 : i32, i32
  }
  func.func @transform_5(%arg0: i32) -> (i32, i32) {
    %c0_i32 = arith.constant 0 : i32
    %c0_i32_0 = arith.constant 0 : i32
    %c0_i32_1 = arith.constant 0 : i32
    return %c0_i32, %c0_i32_0 : i32, i32
  }
  func.func @transform_6(%arg0: i32) -> (i32, i32) {
    %c0_i32 = arith.constant 0 : i32
    %c0_i32_0 = arith.constant 0 : i32
    %c0_i32_1 = arith.constant 0 : i32
    return %c0_i32, %c0_i32_0 : i32, i32
  }
  func.func @transform_7(%arg0: i32) -> (i32, i32) {
    %c0_i32 = arith.constant 0 : i32
    %c0_i32_0 = arith.constant 0 : i32
    %c0_i32_1 = arith.constant 0 : i32
    return %c0_i32, %c0_i32_0 : i32, i32
  }
  func.func @transform_8(%arg0: i32) -> (i32, i32) {
    %c0_i32 = arith.constant 0 : i32
    %c0_i32_0 = arith.constant 0 : i32
    %c0_i32_1 = arith.constant 0 : i32
    return %c0_i32, %c0_i32_0 : i32, i32
  }
  func.func @transform_9(%arg0: i32) -> (i32, i32) {
    %c0_i32 = arith.constant 0 : i32
    %c0_i32_0 = arith.constant 0 : i32
    return %arg0, %c0_i32 : i32, i32
  }
}

</mosaic_0001>

<llo_original>
// kernel: tpu_custom_call.1
$region0: #{tpu_custom_call.1}
  #allocation0 [shape = 'u32[]', space=smem, size = 0x4, offset = 0x4, fixed_abs, tag = 'smem constant byte address 0x4 - core index']
  #allocation1 [shape = 'u32[144,128]{1,0:T(1,128)}', space=vmem, size = 0x12000, scoped, tag = 'internal scratch']
  #allocation2 [shape = 'f32[1,1]{1,0:T(1,128)S(1)}', space=vmem, size = 0x200, scoped, tag = 'scoped memory for tpu_custom_call.1']
  %s0 = inlined_call_operand.vmem [shape: f32[8,32], index: 0, kind: input, shape index: {}]
  %s1 = inlined_call_operand.hbm [shape: f32[8,8], index: 1, kind: input, shape index: {}]
  %s2 = inlined_call_operand.vmem [shape: f32[32,32], index: 2, kind: input, shape index: {}]
  %s3 = inlined_call_operand.vmem [shape: f32[8,32], index: 3, kind: input, shape index: {}]
  %s4 = inlined_call_operand.vmem [shape: f32[1,32], index: 4, kind: input, shape index: {}]
  %s5 = inlined_call_operand.hbm [shape: f32[32,32], index: 5, kind: input, shape index: {}]
  %s6 = inlined_call_operand.vmem [shape: f32[1,32], index: 6, kind: input, shape index: {}]
  %s7 = inlined_call_operand.vmem [shape: f32[32,1], index: 7, kind: input, shape index: {}]
  %s8 = inlined_call_operand.<no memory space> [shape: f32[1,1], index: 8, kind: input, shape index: {}]
  %s9 = inlined_call_operand.vmem [shape: f32[8,1], index: 9, kind: output, shape index: {}]
  %s10 = sld [smem:[#allocation0]]
  $region54: #{tpu_custom_call.1} parent=0
    _
  %s12 = ssub.s32 1, %s10
  %s13 = scalar_select 0, %s12, %s10
  %v14 = vstv %s8
  %15 = vst [vmem:[#allocation2] sm:$0x1] %v14
  $region1: #{tpu_custom_call.1} parent=0
    #allocation3 [shape = 'u8[4096]{0}', space=vmem, size = 0x1000, scoped, tag = 'input window, operand 1, single buffered']
    #allocation4 [shape = 's32[1]{0}', space=sflag, size = 0x4, scoped, tag = 'scoped memory for tpu_custom_call.1']
    #allocation5 [shape = 'u8[16384]{0}', space=vmem, size = 0x4000, scoped, tag = 'input window, operand 5, single buffered']
    #allocation6 [shape = 's32[1]{0}', space=sflag, size = 0x4, scoped, tag = 'scoped memory for tpu_custom_call.1']
    %16 = vsyncpa [#allocation4], 0
    %17 = vsyncpa [#allocation6], 0
    // Predicated region
    $region2: #{tpu_custom_call.1} parent=1 // pred_check
      _
    $region3: #{tpu_custom_call.1} parent=1 // pred_check_branch
      %19 = sbr.rel (0) target = $region5
    $region4: #{tpu_custom_call.1} parent=1 // pred_region
      _
    $region5: #{tpu_custom_call.1} parent=1 // pred_fallthru
      _
    // Predicated region
    $region6: #{tpu_custom_call.1} parent=1 // pred_check
      _
    $region7: #{tpu_custom_call.1} parent=1 // pred_check_branch
      %21 = sbr.rel (0) target = $region9
    $region8: #{tpu_custom_call.1} parent=1 // pred_region
      %s23 = ssub.s32 128, 128
      %24 = vsyncadd [#allocation4], %s23
      %s26 = sshll.u32 [#allocation3], 4
      %s27 = int_to_ptr.vmem [resolvable:$true] %s26
      %29 = dma.hbm_to_vmem [thread:$0]  %s1, 128, %s27, [#allocation4]
    $region9: #{tpu_custom_call.1} parent=1 // pred_fallthru
      _
    // Predicated region
    $region10: #{tpu_custom_call.1} parent=1 // pred_check
      _
    $region11: #{tpu_custom_call.1} parent=1 // pred_check_branch
      %31 = sbr.rel (0) target = $region13
    $region12: #{tpu_custom_call.1} parent=1 // pred_region
      _
    $region13: #{tpu_custom_call.1} parent=1 // pred_fallthru
      _
    // Predicated region
    $region14: #{tpu_custom_call.1} parent=1 // pred_check
      _
    $region15: #{tpu_custom_call.1} parent=1 // pred_check_branch
      %33 = sbr.rel (0) target = $region17
    $region16: #{tpu_custom_call.1} parent=1 // pred_region
      _
    $region17: #{tpu_custom_call.1} parent=1 // pred_fallthru
      _
    // Predicated region
    $region18: #{tpu_custom_call.1} parent=1 // pred_check
      _
    $region19: #{tpu_custom_call.1} parent=1 // pred_check_branch
      %35 = sbr.rel (0) target = $region21
    $region20: #{tpu_custom_call.1} parent=1 // pred_region
      _
    $region21: #{tpu_custom_call.1} parent=1 // pred_fallthru
      _
    // Predicated region
    $region22: #{tpu_custom_call.1} parent=1 // pred_check
      _
    $region23: #{tpu_custom_call.1} parent=1 // pred_check_branch
      %37 = sbr.rel (0) target = $region25
    $region24: #{tpu_custom_call.1} parent=1 // pred_region
      %s39 = ssub.s32 512, 512
      %40 = vsyncadd [#allocation6], %s39
      %s41 = sshll.u32 [#allocation5], 4
      %s42 = int_to_ptr.vmem [resolvable:$true] %s41
      %47 = dma.hbm_to_vmem [thread:$0]  %s5, 512, %s42, [#allocation6], 128, 128, 8
    $region25: #{tpu_custom_call.1} parent=1 // pred_fallthru
      _
    // Predicated region
    $region26: #{tpu_custom_call.1} parent=1 // pred_check
      _
    $region27: #{tpu_custom_call.1} parent=1 // pred_check_branch
      %49 = sbr.rel (0) target = $region29
    $region28: #{tpu_custom_call.1} parent=1 // pred_region
      _
    $region29: #{tpu_custom_call.1} parent=1 // pred_fallthru
      _
    // Predicated region
    $region30: #{tpu_custom_call.1} parent=1 // pred_check
      _
    $region31: #{tpu_custom_call.1} parent=1 // pred_check_branch
      %51 = sbr.rel (0) target = $region33
    $region32: #{tpu_custom_call.1} parent=1 // pred_region
      _
    $region33: #{tpu_custom_call.1} parent=1 // pred_fallthru
      _
    // Predicated region
    $region34: #{tpu_custom_call.1} parent=1 // pred_check
      _
    $region35: #{tpu_custom_call.1} parent=1 // pred_check_branch
      %53 = sbr.rel (0) target = $region37
    $region36: #{tpu_custom_call.1} parent=1 // pred_region
      _
    $region37: #{tpu_custom_call.1} parent=1 // pred_fallthru
      _
    // Predicated region
    $region38: #{tpu_custom_call.1} parent=1 // pred_check
      _
    $region39: #{tpu_custom_call.1} parent=1 // pred_check_branch
      %55 = sbr.rel (0) target = $region41
    $region40: #{tpu_custom_call.1} parent=1 // pred_region
      %56 = dma.done [#allocation4], 128
    $region41: #{tpu_custom_call.1} parent=1 // pred_fallthru
      _
    // Predicated region
    $region42: #{tpu_custom_call.1} parent=1 // pred_check
      _
    $region43: #{tpu_custom_call.1} parent=1 // pred_check_branch
      %58 = sbr.rel (0) target = $region45
    $region44: #{tpu_custom_call.1} parent=1 // pred_region
      %59 = dma.done [#allocation6], 512
    $region45: #{tpu_custom_call.1} parent=1 // pred_fallthru
      _
    %v60 = vld [vmem:[%s0] sm:$0xff]
    %v61 = vld [vmem:[%s2] sm:$0xff]
    %v62 = vld [vmem:[%s2 + $0x8] sm:$0xff]
    %v63 = vld [vmem:[%s2 + $0x10] sm:$0xff]
    %v64 = vld [vmem:[%s2 + $0x18] sm:$0xff]
    %v65 = vld [vmem:[#allocation3] sm:$0xff]
    %v66 = vld [vmem:[%s3] sm:$0xff]
    %vm67 = vcmask 64512
    %v69 = vsel %vm67, %v65, 0
    %71 = vmatprep.subr.mxu0 0.0
    %72 = vmatpush1.msra.mxu0 %v66
    %73 = vmatprep.subr.mxu0 0.0
    %74 = vmatpush1.msra.mxu0 0.0
    %75 = vmatprep.subr.mxu0 0.0
    %76 = vmatpush1.msra.mxu0 0.0
    %77 = vmatprep.subr.mxu0 0.0
    %78 = vmatpush1.msra.mxu0 0.0
    %79 = vmatprep.subr.mxu0 0.0
    %80 = vmatpush1.msra.mxu0 0.0
    %81 = vmatprep.subr.mxu0 0.0
    %82 = vmatpush1.msra.mxu0 0.0
    %83 = vmatprep.subr.mxu0 0.0
    %84 = vmatpush1.msra.mxu0 0.0
    %85 = vmatprep.subr.mxu0 0.0
    %86 = vmatpush1.msra.mxu0 0.0
    %87 = vmatprep.subr.mxu0 0.0
    %88 = vmatpush1.msra.mxu0 0.0
    %89 = vmatprep.subr.mxu0 0.0
    %90 = vmatpush1.msra.mxu0 0.0
    %91 = vmatprep.subr.mxu0 0.0
    %92 = vmatpush1.msra.mxu0 0.0
    %93 = vmatprep.subr.mxu0 0.0
    %94 = vmatpush1.msra.mxu0 0.0
    %95 = vmatprep.subr.mxu0 0.0
    %96 = vmatpush1.msra.mxu0 0.0
    %97 = vmatprep.subr.mxu0 0.0
    %98 = vmatpush1.msra.mxu0 0.0
    %99 = vmatprep.subr.mxu0 0.0
    %100 = vmatpush1.msra.mxu0 0.0
    %101 = vmatprep.subr.mxu0 0.0
    %102 = vmatpush1.msra.mxu0 0.0
    %103 = vmatprep.subr.mxu0 0.0
    %104 = vmatpush1.msra.mxu0 0.0
    %105 = vmatprep.subr.mxu0 0.0
    %106 = vmatpush1.msra.mxu0 0.0
    %107 = vmatprep.subr.mxu0 0.0
    %108 = vmatpush1.msra.mxu0 0.0
    %109 = vmatprep.subr.mxu0 0.0
    %110 = vmatpush1.msra.mxu0 0.0
    %111 = vmatprep.subr.mxu0 0.0
    %112 = vmatpush1.msra.mxu0 0.0
    %113 = vmatprep.subr.mxu0 0.0
    %114 = vmatpush1.msra.mxu0 0.0
    %115 = vmatprep.subr.mxu0 0.0
    %116 = vmatpush1.msra.mxu0 0.0
    %117 = vmatprep.subr.mxu0 0.0
    %118 = vmatpush1.msra.mxu0 0.0
    %119 = vmatprep.subr.mxu0 0.0
    %120 = vmatpush1.msra.mxu0 0.0
    %121 = vmatprep.subr.mxu0 0.0
    %122 = vmatpush1.msra.mxu0 0.0
    %123 = vmatprep.subr.mxu0 0.0
    %124 = vmatpush1.msra.mxu0 0.0
    %125 = vmatprep.subr.mxu0 0.0
    %126 = vmatpush1.msra.mxu0 0.0
    %127 = vmatprep.subr.mxu0 0.0
    %128 = vmatpush1.msra.mxu0 0.0
    %129 = vmatprep.subr.mxu0 0.0
    %130 = vmatpush1.msra.mxu0 0.0
    %131 = vmatprep.subr.mxu0 0.0
    %132 = vmatpush1.msra.mxu0 0.0
    %133 = vmatprep.subr.mxu0 0.0
    %134 = vmatpush1.msra.mxu0 0.0
    %135 = vmatprep.mubr.f32.mxu0 0.0
    %136 = vmatmul.mubr.f32.gmra.mrb[0].mxu0 %v69
    %v137 = vpop.f32.mrb[0].mxu0
    %v138 = vadd.f32 0.0, %v137
    %v139 = vpop.f32.mrb[0].mxu0
    %140 = vdwg.mxu0
    %vm141 = vcmask 261120
    %v143 = vsel %vm141, %v60, 0
    %145 = vmatprep.subr.mxu0 0.0
    %146 = vmatpush1.msra.mxu0 %v61
    %147 = vmatprep.subr.mxu0 0.0
    %148 = vmatpush1.msra.mxu0 %v62
    %149 = vmatprep.subr.mxu0 0.0
    %150 = vmatpush1.msra.mxu0 %v63
    %151 = vmatprep.subr.mxu0 0.0
    %152 = vmatpush1.msra.mxu0 %v64
    %153 = vmatprep.subr.mxu0 0.0
    %154 = vmatpush1.msra.mxu0 0.0
    %155 = vmatprep.subr.mxu0 0.0
    %156 = vmatpush1.msra.mxu0 0.0
    %157 = vmatprep.subr.mxu0 0.0
    %158 = vmatpush1.msra.mxu0 0.0
    %159 = vmatprep.subr.mxu0 0.0
    %160 = vmatpush1.msra.mxu0 0.0
    %161 = vmatprep.subr.mxu0 0.0
    %162 = vmatpush1.msra.mxu0 0.0
    %163 = vmatprep.subr.mxu0 0.0
    %164 = vmatpush1.msra.mxu0 0.0
    %165 = vmatprep.subr.mxu0 0.0
    %166 = vmatpush1.msra.mxu0 0.0
    %167 = vmatprep.subr.mxu0 0.0
    %168 = vmatpush1.msra.mxu0 0.0
    %169 = vmatprep.subr.mxu0 0.0
    %170 = vmatpush1.msra.mxu0 0.0
    %171 = vmatprep.subr.mxu0 0.0
    %172 = vmatpush1.msra.mxu0 0.0
    %173 = vmatprep.subr.mxu0 0.0
    %174 = vmatpush1.msra.mxu0 0.0
    %175 = vmatprep.subr.mxu0 0.0
    %176 = vmatpush1.msra.mxu0 0.0
    %177 = vmatprep.subr.mxu0 0.0
    %178 = vmatpush1.msra.mxu0 0.0
    %179 = vmatprep.subr.mxu0 0.0
    %180 = vmatpush1.msra.mxu0 0.0
    %181 = vmatprep.subr.mxu0 0.0
    %182 = vmatpush1.msra.mxu0 0.0
    %183 = vmatprep.subr.mxu0 0.0
    %184 = vmatpush1.msra.mxu0 0.0
    %185 = vmatprep.subr.mxu0 0.0
    %186 = vmatpush1.msra.mxu0 0.0
    %187 = vmatprep.subr.mxu0 0.0
    %188 = vmatpush1.msra.mxu0 0.0
    %189 = vmatprep.subr.mxu0 0.0
    %190 = vmatpush1.msra.mxu0 0.0
    %191 = vmatprep.subr.mxu0 0.0
    %192 = vmatpush1.msra.mxu0 0.0
    %193 = vmatprep.subr.mxu0 0.0
    %194 = vmatpush1.msra.mxu0 0.0
    %195 = vmatprep.subr.mxu0 0.0
    %196 = vmatpush1.msra.mxu0 0.0
    %197 = vmatprep.subr.mxu0 0.0
    %198 = vmatpush1.msra.mxu0 0.0
    %199 = vmatprep.subr.mxu0 0.0
    %200 = vmatpush1.msra.mxu0 0.0
    %201 = vmatprep.subr.mxu0 0.0
    %202 = vmatpush1.msra.mxu0 0.0
    %203 = vmatprep.subr.mxu0 0.0
    %204 = vmatpush1.msra.mxu0 0.0
    %205 = vmatprep.subr.mxu0 0.0
    %206 = vmatpush1.msra.mxu0 0.0
    %207 = vmatprep.subr.mxu0 0.0
    %208 = vmatpush1.msra.mxu0 0.0
    %209 = vmatprep.mubr.f32.mxu0 0.0
    %210 = vmatmul.mubr.f32.gmra.mrb[0].mxu0 %v143
    %v211 = vpop.f32.mrb[0].mxu0
    %v212 = vadd.f32 %v138, %v211
    %v213 = vpop.f32.mrb[0].mxu0
    %214 = vdwg.mxu0
    %v215 = vld [vmem:[%s4] sm:$0x1]
    %v217 = vlaneseq
    %v218 = vshrl.u32 %v217, 7
    %v219 = vsub.s32 0, %v218
    %v220 = vrot.slane %v215, %v219
    %v222 = vadd.f32 %v212, %v220
    %v223 = vmax.f32 %v222, 0.0
    %v224 = vld [vmem:[#allocation5] sm:$0xff]
    %v225 = vld [vmem:[#allocation5 + $0x8] sm:$0xff]
    %v226 = vld [vmem:[#allocation5 + $0x10] sm:$0xff]
    %v227 = vld [vmem:[#allocation5 + $0x18] sm:$0xff]
    %v228 = vld [vmem:[%s6] sm:$0x1]
    %v230 = vlaneseq
    %v231 = vshrl.u32 %v230, 7
    %v232 = vsub.s32 0, %v231
    %v233 = vrot.slane %v228, %v232
    %v236 = vsel %vm141, %v223, 0
    %238 = vmatprep.subr.mxu0 0.0
    %239 = vmatpush1.msra.mxu0 %v224
    %240 = vmatprep.subr.mxu0 0.0
    %241 = vmatpush1.msra.mxu0 %v225
    %242 = vmatprep.subr.mxu0 0.0
    %243 = vmatpush1.msra.mxu0 %v226
    %244 = vmatprep.subr.mxu0 0.0
    %245 = vmatpush1.msra.mxu0 %v227
    %246 = vmatprep.subr.mxu0 0.0
    %247 = vmatpush1.msra.mxu0 0.0
    %248 = vmatprep.subr.mxu0 0.0
    %249 = vmatpush1.msra.mxu0 0.0
    %250 = vmatprep.subr.mxu0 0.0
    %251 = vmatpush1.msra.mxu0 0.0
    %252 = vmatprep.subr.mxu0 0.0
    %253 = vmatpush1.msra.mxu0 0.0
    %254 = vmatprep.subr.mxu0 0.0
    %255 = vmatpush1.msra.mxu0 0.0
    %256 = vmatprep.subr.mxu0 0.0
    %257 = vmatpush1.msra.mxu0 0.0
    %258 = vmatprep.subr.mxu0 0.0
    %259 = vmatpush1.msra.mxu0 0.0
    %260 = vmatprep.subr.mxu0 0.0
    %261 = vmatpush1.msra.mxu0 0.0
    %262 = vmatprep.subr.mxu0 0.0
    %263 = vmatpush1.msra.mxu0 0.0
    %264 = vmatprep.subr.mxu0 0.0
    %265 = vmatpush1.msra.mxu0 0.0
    %266 = vmatprep.subr.mxu0 0.0
    %267 = vmatpush1.msra.mxu0 0.0
    %268 = vmatprep.subr.mxu0 0.0
    %269 = vmatpush1.msra.mxu0 0.0
    %270 = vmatprep.subr.mxu0 0.0
    %271 = vmatpush1.msra.mxu0 0.0
    %272 = vmatprep.subr.mxu0 0.0
    %273 = vmatpush1.msra.mxu0 0.0
    %274 = vmatprep.subr.mxu0 0.0
    %275 = vmatpush1.msra.mxu0 0.0
    %276 = vmatprep.subr.mxu0 0.0
    %277 = vmatpush1.msra.mxu0 0.0
    %278 = vmatprep.subr.mxu0 0.0
    %279 = vmatpush1.msra.mxu0 0.0
    %280 = vmatprep.subr.mxu0 0.0
    %281 = vmatpush1.msra.mxu0 0.0
    %282 = vmatprep.subr.mxu0 0.0
    %283 = vmatpush1.msra.mxu0 0.0
    %284 = vmatprep.subr.mxu0 0.0
    %285 = vmatpush1.msra.mxu0 0.0
    %286 = vmatprep.subr.mxu0 0.0
    %287 = vmatpush1.msra.mxu0 0.0
    %288 = vmatprep.subr.mxu0 0.0
    %289 = vmatpush1.msra.mxu0 0.0
    %290 = vmatprep.subr.mxu0 0.0
    %291 = vmatpush1.msra.mxu0 0.0
    %292 = vmatprep.subr.mxu0 0.0
    %293 = vmatpush1.msra.mxu0 0.0
    %294 = vmatprep.subr.mxu0 0.0
    %295 = vmatpush1.msra.mxu0 0.0
    %296 = vmatprep.subr.mxu0 0.0
    %297 = vmatpush1.msra.mxu0 0.0
    %298 = vmatprep.subr.mxu0 0.0
    %299 = vmatpush1.msra.mxu0 0.0
    %300 = vmatprep.subr.mxu0 0.0
    %301 = vmatpush1.msra.mxu0 0.0
    %302 = vmatprep.mubr.f32.mxu0 0.0
    %303 = vmatmul.mubr.f32.gmra.mrb[0].mxu0 %v236
    %v304 = vpop.f32.mrb[0].mxu0
    %v305 = vadd.f32 %v233, %v304
    %v306 = vpop.f32.mrb[0].mxu0
    %307 = vdwg.mxu0
    %v308 = vmax.f32 %v305, 0.0
    %v309 = vld [vmem:[%s7] sm:$0xff]
    %v310 = vld [vmem:[%s7 + $0x8] sm:$0xff]
    %v311 = vld [vmem:[%s7 + $0x10] sm:$0xff]
    %v312 = vld [vmem:[%s7 + $0x18] sm:$0xff]
    %v313 = vld [vmem:[#allocation2] sm:$0x1]
    %v315 = vlaneseq
    %v316 = vshrl.u32 %v315, 7
    %v317 = vsub.s32 0, %v316
    %v318 = vrot.slane %v313, %v317
    %v321 = vsel %vm141, %v308, 0
    %323 = vmatprep.subr.mxu0 0.0
    %324 = vmatpush1.msra.mxu0 %v309
    %325 = vmatprep.subr.mxu0 0.0
    %326 = vmatpush1.msra.mxu0 %v310
    %327 = vmatprep.subr.mxu0 0.0
    %328 = vmatpush1.msra.mxu0 %v311
    %329 = vmatprep.subr.mxu0 0.0
    %330 = vmatpush1.msra.mxu0 %v312
    %331 = vmatprep.subr.mxu0 0.0
    %332 = vmatpush1.msra.mxu0 0.0
    %333 = vmatprep.subr.mxu0 0.0
    %334 = vmatpush1.msra.mxu0 0.0
    %335 = vmatprep.subr.mxu0 0.0
    %336 = vmatpush1.msra.mxu0 0.0
    %337 = vmatprep.subr.mxu0 0.0
    %338 = vmatpush1.msra.mxu0 0.0
    %339 = vmatprep.subr.mxu0 0.0
    %340 = vmatpush1.msra.mxu0 0.0
    %341 = vmatprep.subr.mxu0 0.0
    %342 = vmatpush1.msra.mxu0 0.0
    %343 = vmatprep.subr.mxu0 0.0
    %344 = vmatpush1.msra.mxu0 0.0
    %345 = vmatprep.subr.mxu0 0.0
    %346 = vmatpush1.msra.mxu0 0.0
    %347 = vmatprep.subr.mxu0 0.0
    %348 = vmatpush1.msra.mxu0 0.0
    %349 = vmatprep.subr.mxu0 0.0
    %350 = vmatpush1.msra.mxu0 0.0
    %351 = vmatprep.subr.mxu0 0.0
    %352 = vmatpush1.msra.mxu0 0.0
    %353 = vmatprep.subr.mxu0 0.0
    %354 = vmatpush1.msra.mxu0 0.0
    %355 = vmatprep.subr.mxu0 0.0
    %356 = vmatpush1.msra.mxu0 0.0
    %357 = vmatprep.subr.mxu0 0.0
    %358 = vmatpush1.msra.mxu0 0.0
    %359 = vmatprep.subr.mxu0 0.0
    %360 = vmatpush1.msra.mxu0 0.0
    %361 = vmatprep.subr.mxu0 0.0
    %362 = vmatpush1.msra.mxu0 0.0
    %363 = vmatprep.subr.mxu0 0.0
    %364 = vmatpush1.msra.mxu0 0.0
    %365 = vmatprep.subr.mxu0 0.0
    %366 = vmatpush1.msra.mxu0 0.0
    %367 = vmatprep.subr.mxu0 0.0
    %368 = vmatpush1.msra.mxu0 0.0
    %369 = vmatprep.subr.mxu0 0.0
    %370 = vmatpush1.msra.mxu0 0.0
    %371 = vmatprep.subr.mxu0 0.0
    %372 = vmatpush1.msra.mxu0 0.0
    %373 = vmatprep.subr.mxu0 0.0
    %374 = vmatpush1.msra.mxu0 0.0
    %375 = vmatprep.subr.mxu0 0.0
    %376 = vmatpush1.msra.mxu0 0.0
    %377 = vmatprep.subr.mxu0 0.0
    %378 = vmatpush1.msra.mxu0 0.0
    %379 = vmatprep.subr.mxu0 0.0
    %380 = vmatpush1.msra.mxu0 0.0
    %381 = vmatprep.subr.mxu0 0.0
    %382 = vmatpush1.msra.mxu0 0.0
    %383 = vmatprep.subr.mxu0 0.0
    %384 = vmatpush1.msra.mxu0 0.0
    %385 = vmatprep.subr.mxu0 0.0
    %386 = vmatpush1.msra.mxu0 0.0
    %387 = vmatprep.mubr.f32.mxu0 0.0
    %388 = vmatmul.mubr.f32.gmra.mrb[0].mxu0 %v321
    %v389 = vpop.f32.mrb[0].mxu0
    %v390 = vadd.f32 %v318, %v389
    %v391 = vpop.f32.mrb[0].mxu0
    %392 = vdwg.mxu0
    %vm393 = vcmask 7168
    %394 = vst.msk [vmem:[%s9] sm:$0xff] %vm393, %v390
    // Predicated region
    $region46: #{tpu_custom_call.1} parent=1 // pred_check
      _
    $region47: #{tpu_custom_call.1} parent=1 // pred_check_branch
      %396 = sbr.rel (0) target = $region49
    $region48: #{tpu_custom_call.1} parent=1 // pred_region
      _
    $region49: #{tpu_custom_call.1} parent=1 // pred_fallthru
      _
    // Predicated region
    $region50: #{tpu_custom_call.1} parent=1 // pred_check
      _
    $region51: #{tpu_custom_call.1} parent=1 // pred_check_branch
      %398 = sbr.rel (0) target = $region53
    $region52: #{tpu_custom_call.1} parent=1 // pred_region
      _
    $region53: #{tpu_custom_call.1} parent=1 // pred_fallthru
      _
    %399 = vsyncpa [#allocation4], 1
    %400 = vsyncpa [#allocation6], 1

</llo_original>
